<compile_context>
chip_gen: v5e
topology: v5e:2x2
jax: 0.10.0
libtpu: 0.0.40
codegen_flags: <defaults>
</compile_context>

<pallas_src>
import jax
import jax.numpy as jnp
from jax.experimental import pallas as pl
from jax.experimental.pallas import tpu as pltpu


_LANE = 128
_TILE_BYTES = 4 * 1024 * 1024      # per-tile budget (2-4 MiB sweet spot on v7x)
_VMEM_LIMIT = 32 * 1024 * 1024     # explicit scoped-VMEM limit, safe on all gens


def _concat_add_kernel(a_ref, b_ref, o_ref):
    # One (TM, TN) tile of one concat half: out[k] = a + b[k].
    # Pure VPU elementwise work; the kernel is HBM-bandwidth bound, so the
    # body is intentionally left as a single add (per perf review).
    o_ref[...] = a_ref[...] + b_ref[...]


def _pick_lane_width(n, d, itemsize, sub, budget):
    """Lane-dense slab view (R, W) of the flat n*d data with W % 128 == 0."""
    total = n * d
    cands = []
    if d % _LANE == 0:
        cands.append(d)                       # natural layout is already lane-dense
    cands += [2048, 1024, 512, 256, _LANE]
    # Pass 1: prefer widths whose row count is sublane-aligned and whose
    # minimal (sub-row) tile fits the budget.
    for w in cands:
        if total % w == 0 and (total // w) % sub == 0 and sub * w * itemsize <= budget:
            return total // w, w
    # Pass 2: any dividing lane-aligned width (full-extent blocks cover alignment).
    for w in cands:
        if total % w == 0:
            return total // w, w
    return None, None


def _pick_cols(w, itemsize, sub, budget):
    """Tile width: full rows (contiguous DMA) unless W is extremely wide."""
    if sub * w * itemsize <= budget or w <= _LANE:
        return w
    for tn in (2048, 1024, 512, 256, _LANE):
        if w % tn == 0 and sub * tn * itemsize <= budget:
            return tn
    return _LANE  # lane-unaligned *and* huge W: last column block is masked


def _largest_aligned_divisor(r, cap, sub):
    """Largest divisor of r that is <= cap and a multiple of sub (or None)."""
    best = None
    i = 1
    while i * i <= r:
        if r % i == 0:
            for t in (i, r // i):
                if t <= cap and t % sub == 0 and (best is None or t > best):
                    best = t
        i += 1
    return best


def _pick_rows(r, tn, itemsize, sub, budget):
    """Tile height: whole extent if it fits, else biggest clean divisor."""
    max_rows = max(budget // (tn * itemsize), 1)
    if r <= max_rows:
        return r                                  # full extent: always legal
    cap = max((max_rows // sub) * sub, sub)
    exact = _largest_aligned_divisor(r, cap, sub)
    return exact if exact is not None else cap    # else Pallas masks the last tile


def _stream_spec(block_shape, index_map, nbuf):
    """BlockSpec for the streamed operands, with optional deeper buffering."""
    if nbuf > 2 and hasattr(pl, "Buffered"):
        try:
            return pl.BlockSpec(block_shape, index_map,
                                pipeline_mode=pl.Buffered(nbuf))
        except TypeError:
            pass
    return pl.BlockSpec(block_shape, index_map)


def concat_add(a: jax.Array, b: jax.Array, *, donate_b: bool = False) -> jax.Array:
    """Computes jnp.concatenate([a, a], axis=0) + b via a Pallas TPU kernel."""
    assert a.ndim == 2, f"expected 2-D a, got shape {a.shape}"
    n, d = a.shape
    assert b.shape == (2 * n, d), f"b must have shape {(2 * n, d)}, got {b.shape}"
    assert a.dtype == b.dtype, "a and b must share a dtype"

    itemsize = jnp.dtype(a.dtype).itemsize
    sub = max(8, 32 // itemsize)        # sublane multiple: 8 f32, 16 bf16, 32 int8
    total = n * d

    # Lane-dense flat view: a -> (R, W), b/out -> (2, R, W).  Row-major
    # reshapes are free, and out.reshape(2*n, d) is exactly concat([a,a],0)+b.
    r_rows, w_cols = _pick_lane_width(n, d, itemsize, sub, _TILE_BYTES)
    if r_rows is None:
        # n*d not a multiple of 128: keep the natural layout (masked lane
        # tail on stores) but stay on the same tiled, pipelined path.
        r_rows, w_cols = n, d

    tn = _pick_cols(w_cols, itemsize, sub, _TILE_BYTES)
    tm = _pick_rows(r_rows, tn, itemsize, sub, _TILE_BYTES)
    nr = pl.cdiv(r_rows, tm)
    nc = pl.cdiv(w_cols, tn)
    spatial = nr * nc

    # a-tile reuse across the innermost concat axis only pays when there is
    # more than one spatial block; otherwise make it "parallel" so both v7x
    # TensorCores get one concat half (no effect on v5e/v6e).
    concat_sem = "arbitrary" if spatial > 1 else "parallel"
    a_reads = 1 if spatial > 1 else 2

    tile_bytes = tm * tn * itemsize
    # Deeper pipelining on the streamed operands when it fits the VMEM budget
    # and the grid is long enough for a third in-flight copy to matter.
    nbuf = 3 if (8 * tile_bytes <= _VMEM_LIMIT - (4 << 20)
                 and nr * nc * 2 >= 3) else 2

    a_slab = a.reshape(r_rows, w_cols)
    b_slab = b.reshape(2, r_rows, w_cols)

    cost = pl.CostEstimate(
        flops=2 * total,
        transcendentals=0,
        bytes_accessed=(a_reads + 4) * total * itemsize,
    )

    out = pl.pallas_call(
        _concat_add_kernel,
        out_shape=jax.ShapeDtypeStruct((2, r_rows, w_cols), a.dtype),
        grid_spec=pltpu.PrefetchScalarGridSpec(
            num_scalar_prefetch=0,
            grid=(nr, nc, 2),           # concat axis innermost -> a-tile reuse
            in_specs=[
                # `a`: block index independent of k, so the second concat half
                # reuses the already-resident VMEM tile (no extra DMA).
                pl.BlockSpec((tm, tn), lambda i, j, k: (i, j)),
                # `b`: the leading (squeezed) axis selects the concat half.
                _stream_spec((None, tm, tn), lambda i, j, k: (k, i, j), nbuf),
            ],
            out_specs=_stream_spec((None, tm, tn), lambda i, j, k: (k, i, j), nbuf),
        ),
        compiler_params=pltpu.CompilerParams(
            dimension_semantics=("parallel", "parallel", concat_sem),
            vmem_limit_bytes=_VMEM_LIMIT,
        ),
        cost_estimate=cost,
        input_output_aliases={1: 0} if donate_b else {},
    )(a_slab, b_slab)

    return out.reshape(2 * n, d)


if __name__ == "__main__":
    key = jax.random.PRNGKey(0)

    def _check(n, d, dtype=jnp.float32, donate=False):
        ka, kb = jax.random.split(jax.random.fold_in(key, n * 10007 + d))
        a = jax.random.normal(ka, (n, d), dtype=dtype)
        b = jax.random.normal(kb, (2 * n, d), dtype=dtype)
        ref = jnp.concatenate([a, a], axis=0) + b
        out = jax.block_until_ready(concat_add(a, b, donate_b=donate))
        assert out.shape == ref.shape and out.dtype == ref.dtype
        tol = 1e-6 if dtype == jnp.float32 else 1e-2
        assert jnp.allclose(out, ref, atol=tol, rtol=tol), \
            f"mismatch at ({n}, {d}, {dtype})"

    _check(8, 128)                      # tiny: full-extent tiles, grid (1,1,2)
    _check(12, 96)                      # lane-unaligned d -> flattened (9,128) slab
    _check(5, 7)                        # fully unaligned -> full-extent blocks
    _check(16, 256, dtype=jnp.bfloat16)  # packed dtype (sublane multiple 16)
    _check(1024, 512)                   # one 2 MiB tile per half, concat axis parallel
    _check(4096, 512)                   # row-tiled: grid (2,1,2), a-tile reuse
    _check(5120, 512)                   # non-pow2 rows: grid (4,1,2), Buffered(3) path
    _check(8, 128, donate=True)         # output aliases b's buffer

    print("KERNEL_OK")
</pallas_src>

<mosaic_0001>
module attributes {stable_mosaic.version = 11 : i64} {
  func.func @_concat_add_kernel(%arg0: i32, %arg1: i32, %arg2: i32, %arg3: memref<8x128xf32, #tpu.memory_space<vmem>>, %arg4: memref<1x8x128xf32, #tpu.memory_space<vmem>>, %arg5: memref<1x8x128xf32, #tpu.memory_space<vmem>>) attributes {dimension_semantics = [#tpu.dimension_semantics<parallel>, #tpu.dimension_semantics<parallel>, #tpu.dimension_semantics<parallel>], iteration_bounds = array<i64: 1, 1, 2>, scalar_prefetch = 0 : i64, scratch_operands = 0 : i64, tpu.core_type = #tpu.core_type<tc>, window_params = [{transform_indices = @transform_0, window_bounds = array<i64: 8, 128>}, {transform_indices = @transform_1, window_bounds = array<i64: 1, 8, 128>}, {transform_indices = @transform_2, window_bounds = array<i64: 1, 8, 128>}]} {
    %c0 = arith.constant 0 : index
    %c0_0 = arith.constant 0 : index
    %0 = vector.load %arg3[%c0, %c0_0] : memref<8x128xf32, #tpu.memory_space<vmem>>, vector<8x128xf32>
    %c0_1 = arith.constant 0 : index
    %c0_2 = arith.constant 0 : index
    %c0_3 = arith.constant 0 : index
    %1 = vector.load %arg4[%c0_1, %c0_2, %c0_3] : memref<1x8x128xf32, #tpu.memory_space<vmem>>, vector<1x8x128xf32>
    %2 = vector.shape_cast %1 : vector<1x8x128xf32> to vector<8x128xf32>
    %3 = arith.addf %0, %2 : vector<8x128xf32>
    %c0_4 = arith.constant 0 : index
    %c0_5 = arith.constant 0 : index
    %c0_6 = arith.constant 0 : index
    %4 = vector.load %arg5[%c0_4, %c0_5, %c0_6] : memref<1x8x128xf32, #tpu.memory_space<vmem>>, vector<1x8x128xf32>
    %5 = vector.shape_cast %4 : vector<1x8x128xf32> to vector<8x128xf32>
    %6 = vector.shape_cast %3 : vector<8x128xf32> to vector<1x8x128xf32>
    tpu.vector_store %arg5[%c0_4, %c0_5, %c0_6], %6 {strides = array<i32>} : memref<1x8x128xf32, #tpu.memory_space<vmem>>, vector<1x8x128xf32>,
    return
  }
  func.func @transform_0(%arg0: i32, %arg1: i32, %arg2: i32) -> (i32, i32) {
    %c0_i32 = arith.constant 0 : i32
    return %arg0, %arg1 : i32, i32
  }
  func.func @transform_1(%arg0: i32, %arg1: i32, %arg2: i32) -> (i32, i32, i32) {
    %c0_i32 = arith.constant 0 : i32
    return %arg2, %arg0, %arg1 : i32, i32, i32
  }
  func.func @transform_2(%arg0: i32, %arg1: i32, %arg2: i32) -> (i32, i32, i32) {
    %c0_i32 = arith.constant 0 : i32
    return %arg2, %arg0, %arg1 : i32, i32, i32
  }
}

</mosaic_0001>

<llo_original>
// kernel: tpu_custom_call.1
$region0: #{tpu_custom_call.1}
  #allocation0 [shape = 'u32[]', space=smem, size = 0x4, offset = 0x4, fixed_abs, tag = 'smem constant byte address 0x4 - core index']
  #allocation1 [shape = 'u32[72,128]{1,0:T(1,128)}', space=vmem, size = 0x9000, scoped, tag = 'internal scratch']
  %s0 = inlined_call_operand.hbm [shape: f32[8,128], index: 0, kind: input, shape index: {}]
  %s1 = inlined_call_operand.hbm [shape: f32[2,8,128], index: 1, kind: input, shape index: {}]
  %s2 = inlined_call_operand.hbm [shape: f32[2,8,128], index: 2, kind: output, shape index: {}]
  %s3 = sld [smem:[#allocation0]]
  $region49: #{tpu_custom_call.1} parent=0
    _
  %s5 = ssub.s32 1, %s3
  %s6 = scalar_select 0, %s5, %s3
  $region1: #{tpu_custom_call.1} parent=0
    #allocation2 [shape = 'u8[4096]{0}', space=vmem, size = 0x1000, scoped, tag = 'input window, operand 0, single buffered']
    #allocation3 [shape = 's32[2]{0}', space=sflag, size = 0x8, scoped, tag = 'scoped memory for tpu_custom_call.1']
    #allocation4 [shape = 's32[2]{0}', space=sflag, size = 0x8, scoped, tag = 'scoped memory for tpu_custom_call.1']
    #allocation5 [shape = 'u8[8192]{0}', space=vmem, size = 0x2000, scoped, tag = 'input window, operand 1']
    #allocation6 [shape = 's32[2]{0}', space=sflag, size = 0x8, scoped, tag = 'scoped memory for tpu_custom_call.1']
    #allocation7 [shape = 'u8[8192]{0}', space=vmem, size = 0x2000, scoped, tag = 'output window, operand 0']
    %7 = vsyncpa [#allocation3], 0
    %8 = vsyncpa [#allocation6], 0
    %s9 = scalar_lea.sflag [#allocation6], 1
    %10 = vsyncpa %s9, 0
    %11 = vsyncpa [#allocation4], 0
    %s12 = scalar_lea.sflag [#allocation4], 1
    %13 = vsyncpa %s12, 0
    loop: start=0, step=1, limit=4
    $region2: #{tpu_custom_call.1} parent=1 // loop_pre_header
      _
    $region3: #{tpu_custom_call.1} parent=1 // loop_header
      %s15 = sphi 0, %s19
      %p16 = scmp.ge.s32.totalorder %s15, 4
      %s22 = sphi 0, %s41
      %s23 = sphi 0, %s37
      %s24 = sphi 0, %s33
      %s25 = sphi 0, %s22
      %s26 = sphi 0, %s23
      %s27 = sphi 0, %s24
      %s28 = sphi 0, %s25
      %s29 = sphi 0, %s26
      %s30 = sphi 0, %s27
      %s46 = sphi 0, %s48
      %s49 = sphi 0, %s46
      %s50 = sphi 0, %s49
      %s66 = sphi 0, %s50
      %s76 = sphi 0, %s78
      %s79 = sphi 0, %s76
      %s80 = sphi 0, %s79
      %s96 = sphi 0, %s80
      %s106 = sphi 0, %s108
      %s109 = sphi 0, %s106
      %s110 = sphi 0, %s109
      %s126 = sphi 0, %s110
    $region4: #{tpu_custom_call.1} parent=1 // loop_header_branch
      %18 = sbr.rel (%p16) target = $region8
    $region5: #{tpu_custom_call.1} parent=1 // loop_body
      %s20 = ssub.s32 %s15, 1
      %s21 = ssub.s32 %s15, 2
      %s31 = sadd.s32 1, %s24
      %p32 = scmp.ge.s32.totalorder %s31, 2
      %s33 = scalar_select %p32, 0, %s31
      %s34 = sadd.s32 1, %s23
      %s35 = scalar_select %p32, %s34, %s23
      %p36 = scmp.ge.s32.totalorder %s35, 1
      %s37 = scalar_select %p36, 0, %s35
      %s38 = sadd.s32 1, %s22
      %s39 = scalar_select %p36, %s38, %s22
      %p40 = scmp.ge.s32.totalorder %s39, 1
      %s41 = scalar_select %p40, 0, %s39
      %s42 = ssub.s32 %s22, %s41
      %s43 = ssub.s32 %s23, %s37
      %s44 = sor.u32 %s42, %s43
      %p45 = scmp.eq.s32.totalorder %s44, 0
      %s47 = sadd.s32 %s46, 1
      %s48 = scalar_select %p45, %s46, %s47
      %p51 = pneg %p45
      %p52 = scmp.eq.s32.totalorder %s15, 1
      %p53 = por %p51, %p52
      %p54 = scmp.ne.s32.totalorder %s46, %s49
      %p55 = scmp.eq.s32.totalorder %s15, 0
      %p56 = por %p54, %p55
      %p57 = scmp.ne.s32.totalorder %s46, %s49
      %p58 = scmp.eq.s32.totalorder %s20, 1
      %p59 = por %p57, %p58
      %p60 = scmp.ne.s32.totalorder %s49, %s50
      %p61 = scmp.eq.s32.totalorder %s20, 0
      %p62 = por %p60, %p61
      %p63 = scmp.ne.s32.totalorder %s49, %s50
      %p64 = scmp.eq.s32.totalorder %s21, 1
      %p65 = por %p63, %p64
      %p67 = scmp.ne.s32.totalorder %s50, %s66
      %p68 = scmp.eq.s32.totalorder %s21, 0
      %p69 = por %p67, %p68
      %s70 = ssub.s32 %s24, %s33
      %s71 = ssub.s32 %s22, %s41
      %s72 = sor.u32 %s70, %s71
      %s73 = ssub.s32 %s23, %s37
      %s74 = sor.u32 %s72, %s73
      %p75 = scmp.eq.s32.totalorder %s74, 0
      %s77 = sadd.s32 %s76, 1
      %s78 = scalar_select %p75, %s76, %s77
      %p81 = pneg %p75
      %p82 = scmp.eq.s32.totalorder %s15, 1
      %p83 = por %p81, %p82
      %p84 = scmp.ne.s32.totalorder %s76, %s79
      %p85 = scmp.eq.s32.totalorder %s15, 0
      %p86 = por %p84, %p85
      %p87 = scmp.ne.s32.totalorder %s76, %s79
      %p88 = scmp.eq.s32.totalorder %s20, 1
      %p89 = por %p87, %p88
      %p90 = scmp.ne.s32.totalorder %s79, %s80
      %p91 = scmp.eq.s32.totalorder %s20, 0
      %p92 = por %p90, %p91
      %p93 = scmp.ne.s32.totalorder %s79, %s80
      %p94 = scmp.eq.s32.totalorder %s21, 1
      %p95 = por %p93, %p94
      %p97 = scmp.ne.s32.totalorder %s80, %s96
      %p98 = scmp.eq.s32.totalorder %s21, 0
      %p99 = por %p97, %p98
      %s100 = ssub.s32 %s24, %s33
      %s101 = ssub.s32 %s22, %s41
      %s102 = sor.u32 %s100, %s101
      %s103 = ssub.s32 %s23, %s37
      %s104 = sor.u32 %s102, %s103
      %p105 = scmp.eq.s32.totalorder %s104, 0
      %s107 = sadd.s32 %s106, 1
      %s108 = scalar_select %p105, %s106, %s107
      %p111 = pneg %p105
      %p112 = scmp.eq.s32.totalorder %s15, 1
      %p113 = por %p111, %p112
      %p114 = scmp.ne.s32.totalorder %s106, %s109
      %p115 = scmp.eq.s32.totalorder %s15, 0
      %p116 = por %p114, %p115
      %p117 = scmp.ne.s32.totalorder %s106, %s109
      %p118 = scmp.eq.s32.totalorder %s20, 1
      %p119 = por %p117, %p118
      %p120 = scmp.ne.s32.totalorder %s109, %s110
      %p121 = scmp.eq.s32.totalorder %s20, 0
      %p122 = por %p120, %p121
      %p123 = scmp.ne.s32.totalorder %s109, %s110
      %p124 = scmp.eq.s32.totalorder %s21, 1
      %p125 = por %p123, %p124
      %p127 = scmp.ne.s32.totalorder %s110, %s126
      %p128 = scmp.eq.s32.totalorder %s21, 0
      %p129 = por %p127, %p128
      %p130 = scmp.le.s32.totalorder 1, %s15
      %p131 = scmp.lt.s32.totalorder %s15, 3
      %p132 = pnand %p130, %p131
      %p133 = pneg %p132
      // Predicated region
      $region9: #{tpu_custom_call.1} parent=5 // pred_check
        _
      $region10: #{tpu_custom_call.1} parent=5 // pred_check_branch
        %135 = sbr.rel (%p132) target = $region12
      $region11: #{tpu_custom_call.1} parent=5 // pred_region
        %s136 = ssub.s32 %s15, 1
        // Predicated region
        $region13: #{tpu_custom_call.1} parent=11 // pred_check
          %p137 = pneg %p62
        $region14: #{tpu_custom_call.1} parent=11 // pred_check_branch
          %139 = sbr.rel (%p137) target = $region16
        $region15: #{tpu_custom_call.1} parent=11 // pred_region
          %141 = vsyncadd [#allocation3], 0
          %s142 = sadd.s32 %s26, %s25
          %s143 = smul.addr %s142, 8
          %s144 = scalar_lea.hbm %s0, %s143
          %s146 = sshll.u32 %s144, 4
          %s147 = int_to_ptr.hbm [resolvable:$true] %s146
          %s148 = sshll.u32 [#allocation2], 4
          %s149 = int_to_ptr.vmem [resolvable:$true] %s148
          %151 = dma.hbm_to_vmem [thread:$0]  %s147, 128, %s149, [#allocation3]
        $region16: #{tpu_custom_call.1} parent=11 // pred_fallthru
          _
      $region12: #{tpu_custom_call.1} parent=5 // pred_fallthru
        _
      %p152 = scmp.lt.s32.totalorder %s15, 2
      // Predicated region
      $region17: #{tpu_custom_call.1} parent=5 // pred_check
        %p153 = pneg %p152
      $region18: #{tpu_custom_call.1} parent=5 // pred_check_branch
        %155 = sbr.rel (%p153) target = $region20
      $region19: #{tpu_custom_call.1} parent=5 // pred_region
        // Predicated region
        $region21: #{tpu_custom_call.1} parent=19 // pred_check
          %p156 = pneg %p86
        $region22: #{tpu_custom_call.1} parent=19 // pred_check_branch
          %158 = sbr.rel (%p156) target = $region24
        $region23: #{tpu_custom_call.1} parent=19 // pred_region
          %s159 = sand.u32 %s76, 1
          %s160 = scalar_lea.sflag [#allocation6], %s159
          %s161 = sand.u32 %s76, 1
          %s162 = smul.addr %s161, 8
          %s163 = scalar_lea.vmem [#allocation5], %s162
          %165 = vsyncadd %s160, 0
          %s166 = sadd.s32 %s23, %s22
          %s167 = sadd.s32 %s166, %s24
          %s168 = smul.addr %s167, 8
          %s169 = scalar_lea.hbm %s1, %s168
          %s171 = sshll.u32 %s169, 4
          %s172 = int_to_ptr.hbm [resolvable:$true] %s171
          %s173 = sshll.u32 %s163, 4
          %s174 = int_to_ptr.vmem [resolvable:$true] %s173
          %176 = dma.hbm_to_vmem [thread:$0]  %s172, 128, %s174, %s160
        $region24: #{tpu_custom_call.1} parent=19 // pred_fallthru
          _
      $region20: #{tpu_custom_call.1} parent=5 // pred_fallthru
        _
      %p177 = scmp.le.s32.totalorder 1, %s15
      %p178 = scmp.lt.s32.totalorder %s15, 3
      %p179 = pnand %p177, %p178
      %p180 = pneg %p179
      // Predicated region
      $region25: #{tpu_custom_call.1} parent=5 // pred_check
        _
      $region26: #{tpu_custom_call.1} parent=5 // pred_check_branch
        %182 = sbr.rel (%p179) target = $region28
      $region27: #{tpu_custom_call.1} parent=5 // pred_region
        %s183 = ssub.s32 %s15, 1
        // Predicated region
        $region29: #{tpu_custom_call.1} parent=27 // pred_check
          %p184 = pneg %p62
        $region30: #{tpu_custom_call.1} parent=27 // pred_check_branch
          %186 = sbr.rel (%p184) target = $region32
        $region31: #{tpu_custom_call.1} parent=27 // pred_region
          %188 = dma.done [#allocation3], 128
        $region32: #{tpu_custom_call.1} parent=27 // pred_fallthru
          _
        %s189 = sand.u32 %s79, 1
        %s190 = scalar_lea.sflag [#allocation6], %s189
        %s191 = sand.u32 %s79, 1
        %s192 = smul.addr %s191, 8
        %s193 = scalar_lea.vmem [#allocation5], %s192
        // Predicated region
        $region33: #{tpu_custom_call.1} parent=27 // pred_check
          %p194 = pneg %p92
        $region34: #{tpu_custom_call.1} parent=27 // pred_check_branch
          %196 = sbr.rel (%p194) target = $region36
        $region35: #{tpu_custom_call.1} parent=27 // pred_region
          %198 = dma.done %s190, 128
        $region36: #{tpu_custom_call.1} parent=27 // pred_fallthru
          _
        %p199 = pneg %p62
        %p200 = pneg %p59
        %s201 = sand.u32 %s79, 1
        %s202 = scalar_lea.sflag [#allocation6], %s201
        %s203 = sand.u32 %s79, 1
        %s204 = smul.addr %s203, 8
        %s205 = scalar_lea.vmem [#allocation5], %s204
        %p206 = pneg %p92
        %p207 = pneg %p89
        %p208 = pneg %p122
        %p209 = pneg %p119
        %s210 = sand.u32 %s109, 1
        %s211 = scalar_lea.sflag [#allocation4], %s210
        %s212 = sand.u32 %s109, 1
        %s213 = smul.addr %s212, 8
        %s214 = scalar_lea.vmem [#allocation7], %s213
        %v215 = vld [vmem:[#allocation2] sm:$0xff]
        %v216 = vld [vmem:[%s193] sm:$0xff]
        %v217 = vadd.f32 %v215, %v216
        %218 = vst [vmem:[%s214] sm:$0xff] %v217
        %s219 = sand.u32 %s109, 1
        %s220 = scalar_lea.sflag [#allocation4], %s219
        %s221 = sand.u32 %s109, 1
        %s222 = smul.addr %s221, 8
        %s223 = scalar_lea.vmem [#allocation7], %s222
        // Predicated region
        $region37: #{tpu_custom_call.1} parent=27 // pred_check
          %p224 = pneg %p119
        $region38: #{tpu_custom_call.1} parent=27 // pred_check_branch
          %226 = sbr.rel (%p224) target = $region40
        $region39: #{tpu_custom_call.1} parent=27 // pred_region
          %228 = vsyncadd %s220, 0
          %s229 = sadd.s32 %s26, %s25
          %s230 = sadd.s32 %s229, %s27
          %s231 = smul.addr %s230, 8
          %s232 = scalar_lea.hbm %s2, %s231
          %s234 = sshll.u32 %s223, 4
          %s235 = int_to_ptr.vmem [resolvable:$true] %s234
          %s236 = sshll.u32 %s232, 4
          %s237 = int_to_ptr.hbm [resolvable:$true] %s236
          %239 = dma.vmem_to_hbm [thread:$0]  %s235, 128, %s237, %s220
        $region40: #{tpu_custom_call.1} parent=27 // pred_fallthru
          _
      $region28: #{tpu_custom_call.1} parent=5 // pred_fallthru
        _
      %p240 = scmp.le.s32.totalorder 2, %s15
      // Predicated region
      $region41: #{tpu_custom_call.1} parent=5 // pred_check
        %p241 = pneg %p240
      $region42: #{tpu_custom_call.1} parent=5 // pred_check_branch
        %243 = sbr.rel (%p241) target = $region44
      $region43: #{tpu_custom_call.1} parent=5 // pred_region
        %s244 = ssub.s32 %s15, 2
        // Predicated region
        $region45: #{tpu_custom_call.1} parent=43 // pred_check
          %p245 = pneg %p125
        $region46: #{tpu_custom_call.1} parent=43 // pred_check_branch
          %247 = sbr.rel (%p245) target = $region48
        $region47: #{tpu_custom_call.1} parent=43 // pred_region
          %s248 = sand.u32 %s110, 1
          %s249 = scalar_lea.sflag [#allocation4], %s248
          %s250 = sand.u32 %s110, 1
          %s251 = smul.addr %s250, 8
          %s252 = scalar_lea.vmem [#allocation7], %s251
          %254 = dma.done %s249, 128
        $region48: #{tpu_custom_call.1} parent=43 // pred_fallthru
          _
      $region44: #{tpu_custom_call.1} parent=5 // pred_fallthru
        _
    $region6: #{tpu_custom_call.1} parent=1 // loop_footer
      %s19 = sadd.s32 1, %s15
    $region7: #{tpu_custom_call.1} parent=1 // loop_footer_branch
      %14 = sbr.rel target = $region3
    $region8: #{tpu_custom_call.1} parent=1 // loop_exit
      _
    %255 = vsyncpa [#allocation3], 1
    %s256 = scalar_lea.sflag [#allocation3], 1
    %257 = vsyncpa %s256, 1
    %258 = vsyncpa [#allocation6], 1
    %s259 = scalar_lea.sflag [#allocation6], 1
    %260 = vsyncpa %s259, 1
    %261 = vsyncpa [#allocation4], 1
    %s262 = scalar_lea.sflag [#allocation4], 1
    %263 = vsyncpa %s262, 1

</llo_original>
